<compile_context>
chip_gen: v6e
topology: v6e:2x2x1
jax: 0.10.0
libtpu: 0.0.40
codegen_flags: <defaults>
</compile_context>

<pallas_src>
import functools
import math

import jax
import jax.numpy as jnp
from jax.experimental import pallas as pl
from jax.experimental.pallas import tpu as pltpu

LOG_SIG_MAX = 2.0
LOG_SIG_MIN = -20.0

LANE = 128      # lane width: pad weight lane dims to a multiple of this
SUBLANE = 8     # sublane width: batch tiles are multiples of this


def _round_up(x, m):
    return ((x + m - 1) // m) * m


# ---------------------------------------------------------------------------
# Kernel
# ---------------------------------------------------------------------------
def _policy_kernel(bf16_act,
                   s_ref, w1_ref, b1_ref, w2_ref, b2_ref, wh_ref, bh_ref,
                   lo_ref, hi_ref, out_ref):
    wdt = w1_ref.dtype  # bf16 (MXU operand dtype)

    def act(acc_f32):
        # ReLU. Cast-before-max on bf16-VALU chips (v6e/v7x) halves the live
        # vreg footprint of the (tb, h_pad) intermediate; cast-after-max on
        # v5e (no bf16 VPU). The two orders are mathematically identical
        # (the cast is monotone and preserves 0).
        if bf16_act:
            return jnp.maximum(acc_f32.astype(wdt), 0)
        return jnp.maximum(acc_f32, 0.0).astype(wdt)

    # Layer 1: (TB, IN) @ (IN, H_PAD) -> f32 accumulate, f32 bias add.
    x = jnp.dot(s_ref[...].astype(wdt), w1_ref[...],
                preferred_element_type=jnp.float32) + b1_ref[...]
    x = act(x)

    # Layer 2.
    x = jnp.dot(x, w2_ref[...], preferred_element_type=jnp.float32) + b2_ref[...]
    x = act(x)

    # Fused heads: one (TB, H_PAD) @ (H_PAD, OUT_PAD) matmul, one wide store.
    # Per-column clamp: mean columns get (-inf, +inf) (pass-through), log_std
    # columns get (LOG_SIG_MIN, LOG_SIG_MAX). Two VPU ops per output vreg.
    h = jnp.dot(x, wh_ref[...], preferred_element_type=jnp.float32) + bh_ref[...]
    out_ref[...] = jnp.minimum(jnp.maximum(h, lo_ref[...]),
                               hi_ref[...]).astype(out_ref.dtype)


# ---------------------------------------------------------------------------
# Host-side parameter packing (done once): pad lane dims to multiples of 128,
# fuse the two heads, cast matmul operands to bf16 (biases stay f32), build
# the per-column clamp vectors.
# ---------------------------------------------------------------------------
def pack_params(params):
    num_inputs, hidden = params["w1"].shape
    num_actions = params["wm"].shape[1]

    h_pad = _round_up(hidden, LANE)
    out_pad = _round_up(2 * num_actions, LANE)

    def pad2(a, rows, cols):
        return jnp.zeros((rows, cols), a.dtype).at[:a.shape[0], :a.shape[1]].set(a)

    wh = jnp.concatenate([params["wm"], params["wl"]], axis=1)   # (H, 2A)
    bh = jnp.concatenate([params["bm"], params["bl"]], axis=1)   # (1, 2A)

    # Clamp vectors: -inf/+inf on mean + padding columns, LOG_SIG_* on log_std.
    lo = jnp.full((1, out_pad), -jnp.inf, jnp.float32)
    lo = lo.at[0, num_actions:2 * num_actions].set(LOG_SIG_MIN)
    hi = jnp.full((1, out_pad), jnp.inf, jnp.float32)
    hi = hi.at[0, num_actions:2 * num_actions].set(LOG_SIG_MAX)

    return {
        "num_inputs": num_inputs,
        "num_actions": num_actions,
        # w1 keeps its true K (= num_inputs) rows; only the lane dim is padded.
        "w1": pad2(params["w1"], num_inputs, h_pad).astype(jnp.bfloat16),
        "b1": pad2(params["b1"], 1, h_pad).astype(jnp.float32),
        "w2": pad2(params["w2"], h_pad, h_pad).astype(jnp.bfloat16),
        "b2": pad2(params["b2"], 1, h_pad).astype(jnp.float32),
        "wh": pad2(wh, h_pad, out_pad).astype(jnp.bfloat16),
        "bh": pad2(bh, 1, out_pad).astype(jnp.float32),
        "lo": lo,
        "hi": hi,
    }


# ---------------------------------------------------------------------------
# Wrapper: batch-tiled pallas_call with single-buffered resident weights.
# ---------------------------------------------------------------------------
def gaussian_policy_forward(state, packed, *, block_b=1024,
                            out_dtype=jnp.float32, bf16_act=None):
    """state: (B, num_inputs) f32 -> (mean, log_std), each (B, num_actions) f32."""
    B, num_inputs = state.shape
    A = packed["num_actions"]
    h_pad = packed["w1"].shape[1]
    out_pad = packed["wh"].shape[1]

    if bf16_act is None:
        # bf16 VALU exists on v6e/v7x; v2-v5 do the ReLU in f32.
        kind = jax.devices()[0].device_kind.lower()
        bf16_act = not any(v in kind for v in ("v2", "v3", "v4", "v5"))

    # Batch tile: as large as possible (amortize ~0.35us/step pipeline
    # overhead), a multiple of 8 sublanes, never exceeding the batch, and small
    # enough that large batches produce >= 2 grid steps so the "parallel" axis
    # actually splits across the two v7x TensorCores.
    tb = _round_up(min(block_b, max(B, 1)), SUBLANE)
    tb = min(tb, max(SUBLANE, _round_up(pl.cdiv(max(B, 1), 2), SUBLANE)))
    grid = (pl.cdiv(B, tb),)   # trailing partial batch block is masked by Pallas

    def const_spec(shape):
        # Same block every grid step -> stays VMEM-resident; single buffer
        # (constant data never needs double-buffering).
        return pl.BlockSpec(shape, lambda i: (0, 0),
                            pipeline_mode=pl.Buffered(1))

    param_bytes = sum(int(packed[k].size) * packed[k].dtype.itemsize
                      for k in ("w1", "b1", "w2", "b2", "wh", "bh", "lo", "hi"))
    cost = pl.CostEstimate(
        flops=2 * B * (num_inputs * h_pad + h_pad * h_pad + h_pad * out_pad),
        transcendentals=0,
        bytes_accessed=(B * num_inputs * state.dtype.itemsize
                        + B * out_pad * jnp.dtype(out_dtype).itemsize
                        + param_bytes),
    )

    fn = pl.pallas_call(
        functools.partial(_policy_kernel, bf16_act),
        out_shape=jax.ShapeDtypeStruct((B, out_pad), out_dtype),
        grid=grid,
        in_specs=[
            # state: pipelined over the batch; last block dim == full array dim
            # so no lane padding / host-side pad+cast pass is needed.
            pl.BlockSpec((tb, num_inputs), lambda i: (i, 0)),
            const_spec((num_inputs, h_pad)),   # w1
            const_spec((1, h_pad)),            # b1
            const_spec((h_pad, h_pad)),        # w2
            const_spec((1, h_pad)),            # b2
            const_spec((h_pad, out_pad)),      # fused head weight
            const_spec((1, out_pad)),          # fused head bias
            const_spec((1, out_pad)),          # per-column clamp lo
            const_spec((1, out_pad)),          # per-column clamp hi
        ],
        out_specs=pl.BlockSpec((tb, out_pad), lambda i: (i, 0)),
        compiler_params=pltpu.CompilerParams(
            dimension_semantics=("parallel",),   # v7x: shard batch over 2 TCs
        ),
        cost_estimate=cost,
    )
    out = fn(state, packed["w1"], packed["b1"], packed["w2"], packed["b2"],
             packed["wh"], packed["bh"], packed["lo"], packed["hi"])

    mean = out[:, :A].astype(jnp.float32)
    log_std = out[:, A:2 * A].astype(jnp.float32)
    return mean, log_std


# ---------------------------------------------------------------------------
# Init (matches torch xavier_uniform_ gain=1, zero bias) and references.
# ---------------------------------------------------------------------------
def xavier_uniform(key, fan_in, fan_out, gain=1.0):
    bound = gain * math.sqrt(6.0 / (fan_in + fan_out))
    return jax.random.uniform(key, (fan_in, fan_out), jnp.float32, -bound, bound)


def init_params(key, num_inputs, num_actions, hidden_dim):
    k1, k2, k3, k4 = jax.random.split(key, 4)
    return {
        "w1": xavier_uniform(k1, num_inputs, hidden_dim),
        "b1": jnp.zeros((1, hidden_dim), jnp.float32),
        "w2": xavier_uniform(k2, hidden_dim, hidden_dim),
        "b2": jnp.zeros((1, hidden_dim), jnp.float32),
        "wm": xavier_uniform(k3, hidden_dim, num_actions),
        "bm": jnp.zeros((1, num_actions), jnp.float32),
        "wl": xavier_uniform(k4, hidden_dim, num_actions),
        "bl": jnp.zeros((1, num_actions), jnp.float32),
    }


def reference_forward_f32(state, p):
    x = jnp.maximum(state @ p["w1"] + p["b1"], 0.0)
    x = jnp.maximum(x @ p["w2"] + p["b2"], 0.0)
    mean = x @ p["wm"] + p["bm"]
    log_std = jnp.clip(x @ p["wl"] + p["bl"], LOG_SIG_MIN, LOG_SIG_MAX)
    return mean, log_std


def reference_forward_bf16(state, p):
    # Emulates the kernel's numerics: bf16 MXU operands, f32 accumulate/elementwise.
    def mm(x, w):
        return jnp.dot(x.astype(jnp.bfloat16).astype(jnp.float32),
                       w.astype(jnp.bfloat16).astype(jnp.float32),
                       preferred_element_type=jnp.float32)
    x = jnp.maximum(mm(state, p["w1"]) + p["b1"], 0.0)
    x = jnp.maximum(mm(x, p["w2"]) + p["b2"], 0.0)
    mean = mm(x, p["wm"]) + p["bm"]
    log_std = jnp.clip(mm(x, p["wl"]) + p["bl"], LOG_SIG_MIN, LOG_SIG_MAX)
    return mean, log_std


if __name__ == "__main__":
    key = jax.random.PRNGKey(0)
    k_param, k_state = jax.random.split(key)

    batch, num_inputs, num_actions, hidden_dim = 2, 16, 8, 32
    params = init_params(k_param, num_inputs, num_actions, hidden_dim)
    packed = pack_params(params)
    state = jax.random.normal(k_state, (batch, num_inputs), jnp.float32)

    mean, log_std = gaussian_policy_forward(state, packed)
    jax.block_until_ready((mean, log_std))

    assert mean.shape == (batch, num_actions)
    assert log_std.shape == (batch, num_actions)

    # Tight check vs bf16-emulated reference (same numerics as the kernel).
    ref_mean_b, ref_ls_b = reference_forward_bf16(state, params)
    assert jnp.allclose(mean, ref_mean_b, atol=2e-3, rtol=2e-3)
    assert jnp.allclose(log_std, ref_ls_b, atol=2e-3, rtol=2e-3)

    # Loose check vs pure-f32 reference (bf16 operand rounding only).
    ref_mean, ref_ls = reference_forward_f32(state, params)
    assert jnp.allclose(mean, ref_mean, atol=5e-2, rtol=5e-2)
    assert jnp.allclose(log_std, ref_ls, atol=5e-2, rtol=5e-2)

    print("KERNEL_OK")
</pallas_src>

<mosaic_0001>
module attributes {stable_mosaic.version = 11 : i64} {
  func.func @_policy_kernel(%arg0: i32, %arg1: memref<8x16xf32, #tpu.memory_space<vmem>>, %arg2: memref<16x128xbf16, #tpu.memory_space<vmem>>, %arg3: memref<1x128xf32, #tpu.memory_space<vmem>>, %arg4: memref<128x128xbf16, #tpu.memory_space<vmem>>, %arg5: memref<1x128xf32, #tpu.memory_space<vmem>>, %arg6: memref<128x128xbf16, #tpu.memory_space<vmem>>, %arg7: memref<1x128xf32, #tpu.memory_space<vmem>>, %arg8: memref<1x128xf32, #tpu.memory_space<vmem>>, %arg9: memref<1x128xf32, #tpu.memory_space<vmem>>, %arg10: memref<8x128xf32, #tpu.memory_space<vmem>>) attributes {dimension_semantics = [#tpu.dimension_semantics<parallel>], iteration_bounds = array<i64: 1>, scalar_prefetch = 0 : i64, scratch_operands = 0 : i64, tpu.core_type = #tpu.core_type<tc>, window_params = [{transform_indices = @transform_0, window_bounds = array<i64: 8, 16>}, {pipeline_mode = #tpu.pipeline_mode<synchronous>, transform_indices = @transform_1, window_bounds = array<i64: 16, 128>}, {pipeline_mode = #tpu.pipeline_mode<synchronous>, transform_indices = @transform_2, window_bounds = array<i64: 1, 128>}, {pipeline_mode = #tpu.pipeline_mode<synchronous>, transform_indices = @transform_3, window_bounds = array<i64: 128, 128>}, {pipeline_mode = #tpu.pipeline_mode<synchronous>, transform_indices = @transform_4, window_bounds = array<i64: 1, 128>}, {pipeline_mode = #tpu.pipeline_mode<synchronous>, transform_indices = @transform_5, window_bounds = array<i64: 128, 128>}, {pipeline_mode = #tpu.pipeline_mode<synchronous>, transform_indices = @transform_6, window_bounds = array<i64: 1, 128>}, {pipeline_mode = #tpu.pipeline_mode<synchronous>, transform_indices = @transform_7, window_bounds = array<i64: 1, 128>}, {pipeline_mode = #tpu.pipeline_mode<synchronous>, transform_indices = @transform_8, window_bounds = array<i64: 1, 128>}, {transform_indices = @transform_9, window_bounds = array<i64: 8, 128>}]} {
    %c0 = arith.constant 0 : index
    %c0_0 = arith.constant 0 : index
    %0 = vector.load %arg1[%c0, %c0_0] : memref<8x16xf32, #tpu.memory_space<vmem>>, vector<8x16xf32>
    %1 = arith.truncf %0 : vector<8x16xf32> to vector<8x16xbf16>
    %c0_1 = arith.constant 0 : index
    %c0_2 = arith.constant 0 : index
    %2 = vector.load %arg2[%c0_1, %c0_2] : memref<16x128xbf16, #tpu.memory_space<vmem>>, vector<16x128xbf16>
    %cst = arith.constant dense<0.000000e+00> : vector<8x128xf32>
    %3 = tpu.matmul %1, %2, %cst {dimension_numbers = #tpu.dot_dimension_numbers<[1], [0], [0], [1], [0, 0, 1, 1], [], []>} : vector<8x16xbf16>, vector<16x128xbf16>, vector<8x128xf32> -> vector<8x128xf32>
    %c0_3 = arith.constant 0 : index
    %c0_4 = arith.constant 0 : index
    %4 = vector.load %arg3[%c0_3, %c0_4] : memref<1x128xf32, #tpu.memory_space<vmem>>, vector<1x128xf32>
    %5 = vector.broadcast %4 : vector<1x128xf32> to vector<8x128xf32>
    %6 = arith.addf %3, %5 : vector<8x128xf32>
    %7 = arith.truncf %6 : vector<8x128xf32> to vector<8x128xbf16>
    %cst_5 = arith.constant 0.000000e+00 : bf16
    %8 = vector.broadcast %cst_5 : bf16 to vector<8x128xbf16>
    %9 = arith.maximumf %7, %8 : vector<8x128xbf16>
    %c0_6 = arith.constant 0 : index
    %c0_7 = arith.constant 0 : index
    %10 = vector.load %arg4[%c0_6, %c0_7] : memref<128x128xbf16, #tpu.memory_space<vmem>>, vector<128x128xbf16>
    %cst_8 = arith.constant dense<0.000000e+00> : vector<8x128xf32>
    %11 = tpu.matmul %9, %10, %cst_8 {dimension_numbers = #tpu.dot_dimension_numbers<[1], [0], [0], [1], [0, 0, 1, 1], [], []>} : vector<8x128xbf16>, vector<128x128xbf16>, vector<8x128xf32> -> vector<8x128xf32>
    %c0_9 = arith.constant 0 : index
    %c0_10 = arith.constant 0 : index
    %12 = vector.load %arg5[%c0_9, %c0_10] : memref<1x128xf32, #tpu.memory_space<vmem>>, vector<1x128xf32>
    %13 = vector.broadcast %12 : vector<1x128xf32> to vector<8x128xf32>
    %14 = arith.addf %11, %13 : vector<8x128xf32>
    %15 = arith.truncf %14 : vector<8x128xf32> to vector<8x128xbf16>
    %cst_11 = arith.constant 0.000000e+00 : bf16
    %16 = vector.broadcast %cst_11 : bf16 to vector<8x128xbf16>
    %17 = arith.maximumf %15, %16 : vector<8x128xbf16>
    %c0_12 = arith.constant 0 : index
    %c0_13 = arith.constant 0 : index
    %18 = vector.load %arg6[%c0_12, %c0_13] : memref<128x128xbf16, #tpu.memory_space<vmem>>, vector<128x128xbf16>
    %cst_14 = arith.constant dense<0.000000e+00> : vector<8x128xf32>
    %19 = tpu.matmul %17, %18, %cst_14 {dimension_numbers = #tpu.dot_dimension_numbers<[1], [0], [0], [1], [0, 0, 1, 1], [], []>} : vector<8x128xbf16>, vector<128x128xbf16>, vector<8x128xf32> -> vector<8x128xf32>
    %c0_15 = arith.constant 0 : index
    %c0_16 = arith.constant 0 : index
    %20 = vector.load %arg7[%c0_15, %c0_16] : memref<1x128xf32, #tpu.memory_space<vmem>>, vector<1x128xf32>
    %21 = vector.broadcast %20 : vector<1x128xf32> to vector<8x128xf32>
    %22 = arith.addf %19, %21 : vector<8x128xf32>
    %c0_17 = arith.constant 0 : index
    %c0_18 = arith.constant 0 : index
    %23 = vector.load %arg8[%c0_17, %c0_18] : memref<1x128xf32, #tpu.memory_space<vmem>>, vector<1x128xf32>
    %24 = vector.broadcast %23 : vector<1x128xf32> to vector<8x128xf32>
    %25 = arith.maximumf %22, %24 : vector<8x128xf32>
    %c0_19 = arith.constant 0 : index
    %c0_20 = arith.constant 0 : index
    %26 = vector.load %arg9[%c0_19, %c0_20] : memref<1x128xf32, #tpu.memory_space<vmem>>, vector<1x128xf32>
    %27 = vector.broadcast %26 : vector<1x128xf32> to vector<8x128xf32>
    %28 = arith.minimumf %25, %27 : vector<8x128xf32>
    %c0_21 = arith.constant 0 : index
    %c0_22 = arith.constant 0 : index
    %29 = vector.load %arg10[%c0_21, %c0_22] : memref<8x128xf32, #tpu.memory_space<vmem>>, vector<8x128xf32>
    tpu.vector_store %arg10[%c0_21, %c0_22], %28 {strides = array<i32>} : memref<8x128xf32, #tpu.memory_space<vmem>>, vector<8x128xf32>,
    return
  }
  func.func @transform_0(%arg0: i32) -> (i32, i32) {
    %c0_i32 = arith.constant 0 : i32
    %c0_i32_0 = arith.constant 0 : i32
    return %arg0, %c0_i32 : i32, i32
  }
  func.func @transform_1(%arg0: i32) -> (i32, i32) {
    %c0_i32 = arith.constant 0 : i32
    %c0_i32_0 = arith.constant 0 : i32
    %c0_i32_1 = arith.constant 0 : i32
    return %c0_i32, %c0_i32_0 : i32, i32
  }
  func.func @transform_2(%arg0: i32) -> (i32, i32) {
    %c0_i32 = arith.constant 0 : i32
    %c0_i32_0 = arith.constant 0 : i32
    %c0_i32_1 = arith.constant 0 : i32
    return %c0_i32, %c0_i32_0 : i32, i32
  }
  func.func @transform_3(%arg0: i32) -> (i32, i32) {
    %c0_i32 = arith.constant 0 : i32
    %c0_i32_0 = arith.constant 0 : i32
    %c0_i32_1 = arith.constant 0 : i32
    return %c0_i32, %c0_i32_0 : i32, i32
  }
  func.func @transform_4(%arg0: i32) -> (i32, i32) {
    %c0_i32 = arith.constant 0 : i32
    %c0_i32_0 = arith.constant 0 : i32
    %c0_i32_1 = arith.constant 0 : i32
    return %c0_i32, %c0_i32_0 : i32, i32
  }
  func.func @transform_5(%arg0: i32) -> (i32, i32) {
    %c0_i32 = arith.constant 0 : i32
    %c0_i32_0 = arith.constant 0 : i32
    %c0_i32_1 = arith.constant 0 : i32
    return %c0_i32, %c0_i32_0 : i32, i32
  }
  func.func @transform_6(%arg0: i32) -> (i32, i32) {
    %c0_i32 = arith.constant 0 : i32
    %c0_i32_0 = arith.constant 0 : i32
    %c0_i32_1 = arith.constant 0 : i32
    return %c0_i32, %c0_i32_0 : i32, i32
  }
  func.func @transform_7(%arg0: i32) -> (i32, i32) {
    %c0_i32 = arith.constant 0 : i32
    %c0_i32_0 = arith.constant 0 : i32
    %c0_i32_1 = arith.constant 0 : i32
    return %c0_i32, %c0_i32_0 : i32, i32
  }
  func.func @transform_8(%arg0: i32) -> (i32, i32) {
    %c0_i32 = arith.constant 0 : i32
    %c0_i32_0 = arith.constant 0 : i32
    %c0_i32_1 = arith.constant 0 : i32
    return %c0_i32, %c0_i32_0 : i32, i32
  }
  func.func @transform_9(%arg0: i32) -> (i32, i32) {
    %c0_i32 = arith.constant 0 : i32
    %c0_i32_0 = arith.constant 0 : i32
    return %arg0, %c0_i32 : i32, i32
  }
}

</mosaic_0001>

<llo_original>
// kernel: tpu_custom_call.1
$region0: #{tpu_custom_call.1}
  #allocation0 [shape = 'u32[]', space=smem, size = 0x4, offset = 0x4, fixed_abs, tag = 'smem constant byte address 0x4 - core index']
  #allocation1 [shape = 'u32[144,128]{1,0:T(1,128)}', space=vmem, size = 0x12000, scoped, tag = 'internal scratch']
  %s0 = inlined_call_operand.hbm [shape: f32[2,16], index: 0, kind: input, shape index: {}]
  %s1 = inlined_call_operand.hbm [shape: bf16[16,128], index: 1, kind: input, shape index: {}]
  %s2 = inlined_call_operand.vmem [shape: f32[1,128], index: 2, kind: input, shape index: {}]
  %s3 = inlined_call_operand.hbm [shape: bf16[128,128], index: 3, kind: input, shape index: {}]
  %s4 = inlined_call_operand.vmem [shape: f32[1,128], index: 4, kind: input, shape index: {}]
  %s5 = inlined_call_operand.hbm [shape: bf16[128,128], index: 5, kind: input, shape index: {}]
  %s6 = inlined_call_operand.vmem [shape: f32[1,128], index: 6, kind: input, shape index: {}]
  %s7 = inlined_call_operand.vmem [shape: f32[1,128], index: 7, kind: input, shape index: {}]
  %s8 = inlined_call_operand.vmem [shape: f32[1,128], index: 8, kind: input, shape index: {}]
  %s9 = inlined_call_operand.hbm [shape: f32[2,128], index: 9, kind: output, shape index: {}]
  %s10 = sld [smem:[#allocation0]]
  $region62: #{tpu_custom_call.1} parent=0
    _
  %s12 = ssub.s32 1, %s10
  %s13 = scalar_select 0, %s12, %s10
  $region1: #{tpu_custom_call.1} parent=0
    #allocation2 [shape = 'u8[4096]{0}', space=vmem, size = 0x1000, scoped, tag = 'input window, operand 0, single buffered']
    #allocation3 [shape = 's32[1]{0}', space=sflag, size = 0x4, scoped, tag = 'scoped memory for tpu_custom_call.1']
    #allocation4 [shape = 's32[1]{0}', space=sflag, size = 0x4, scoped, tag = 'scoped memory for tpu_custom_call.1']
    #allocation5 [shape = 'u8[4096]{0}', space=vmem, size = 0x1000, scoped, tag = 'input window, operand 1, single buffered']
    #allocation6 [shape = 's32[1]{0}', space=sflag, size = 0x4, scoped, tag = 'scoped memory for tpu_custom_call.1']
    #allocation7 [shape = 'u8[32768]{0}', space=vmem, size = 0x8000, scoped, tag = 'input window, operand 3, single buffered']
    #allocation8 [shape = 'u8[32768]{0}', space=vmem, size = 0x8000, scoped, tag = 'input window, operand 5, single buffered']
    #allocation9 [shape = 's32[1]{0}', space=sflag, size = 0x4, scoped, tag = 'scoped memory for tpu_custom_call.1']
    #allocation10 [shape = 'u8[4096]{0}', space=vmem, size = 0x1000, scoped, tag = 'output window, operand 0, single buffered']
    %14 = vsyncpa [#allocation3], 0
    %15 = vsyncpa [#allocation6], 0
    %16 = vsyncpa [#allocation9], 0
    %17 = vsyncpa [#allocation4], 0
    // Predicated region
    $region2: #{tpu_custom_call.1} parent=1 // pred_check
      _
    $region3: #{tpu_custom_call.1} parent=1 // pred_check_branch
      %19 = sbr.rel (0) target = $region5
    $region4: #{tpu_custom_call.1} parent=1 // pred_region
      %s21 = ssub.s32 128, 32
      %22 = vsyncadd [#allocation3], %s21
      %s23 = sshll.u32 [#allocation2], 4
      %s24 = int_to_ptr.vmem [resolvable:$true] %s23
      %29 = dma.hbm_to_vmem [thread:$0]  %s0, 32, %s24, [#allocation3], 32, 32, 2
    $region5: #{tpu_custom_call.1} parent=1 // pred_fallthru
      _
    // Predicated region
    $region6: #{tpu_custom_call.1} parent=1 // pred_check
      _
    $region7: #{tpu_custom_call.1} parent=1 // pred_check_branch
      %31 = sbr.rel (0) target = $region9
    $region8: #{tpu_custom_call.1} parent=1 // pred_region
      %s33 = ssub.s32 128, 128
      %34 = vsyncadd [#allocation6], %s33
      %s35 = sshll.u32 [#allocation5], 4
      %s36 = int_to_ptr.vmem [resolvable:$true] %s35
      %41 = dma.hbm_to_vmem [thread:$0]  %s1, 128, %s36, [#allocation6], 64, 64, 4
    $region9: #{tpu_custom_call.1} parent=1 // pred_fallthru
      _
    // Predicated region
    $region10: #{tpu_custom_call.1} parent=1 // pred_check
      _
    $region11: #{tpu_custom_call.1} parent=1 // pred_check_branch
      %43 = sbr.rel (0) target = $region13
    $region12: #{tpu_custom_call.1} parent=1 // pred_region
      _
    $region13: #{tpu_custom_call.1} parent=1 // pred_fallthru
      _
    // Predicated region
    $region14: #{tpu_custom_call.1} parent=1 // pred_check
      _
    $region15: #{tpu_custom_call.1} parent=1 // pred_check_branch
      %45 = sbr.rel (0) target = $region17
    $region16: #{tpu_custom_call.1} parent=1 // pred_region
      %s47 = ssub.s32 1024, 1024
      %48 = vsyncadd [#allocation6], %s47
      %s49 = sshll.u32 [#allocation7], 4
      %s50 = int_to_ptr.vmem [resolvable:$true] %s49
      %55 = dma.hbm_to_vmem [thread:$0]  %s3, 1024, %s50, [#allocation6], 64, 64, 4
    $region17: #{tpu_custom_call.1} parent=1 // pred_fallthru
      _
    // Predicated region
    $region18: #{tpu_custom_call.1} parent=1 // pred_check
      _
    $region19: #{tpu_custom_call.1} parent=1 // pred_check_branch
      %57 = sbr.rel (0) target = $region21
    $region20: #{tpu_custom_call.1} parent=1 // pred_region
      _
    $region21: #{tpu_custom_call.1} parent=1 // pred_fallthru
      _
    // Predicated region
    $region22: #{tpu_custom_call.1} parent=1 // pred_check
      _
    $region23: #{tpu_custom_call.1} parent=1 // pred_check_branch
      %59 = sbr.rel (0) target = $region25
    $region24: #{tpu_custom_call.1} parent=1 // pred_region
      %s61 = ssub.s32 1024, 1024
      %62 = vsyncadd [#allocation9], %s61
      %s63 = sshll.u32 [#allocation8], 4
      %s64 = int_to_ptr.vmem [resolvable:$true] %s63
      %69 = dma.hbm_to_vmem [thread:$0]  %s5, 1024, %s64, [#allocation9], 64, 64, 4
    $region25: #{tpu_custom_call.1} parent=1 // pred_fallthru
      _
    // Predicated region
    $region26: #{tpu_custom_call.1} parent=1 // pred_check
      _
    $region27: #{tpu_custom_call.1} parent=1 // pred_check_branch
      %71 = sbr.rel (0) target = $region29
    $region28: #{tpu_custom_call.1} parent=1 // pred_region
      _
    $region29: #{tpu_custom_call.1} parent=1 // pred_fallthru
      _
    // Predicated region
    $region30: #{tpu_custom_call.1} parent=1 // pred_check
      _
    $region31: #{tpu_custom_call.1} parent=1 // pred_check_branch
      %73 = sbr.rel (0) target = $region33
    $region32: #{tpu_custom_call.1} parent=1 // pred_region
      _
    $region33: #{tpu_custom_call.1} parent=1 // pred_fallthru
      _
    // Predicated region
    $region34: #{tpu_custom_call.1} parent=1 // pred_check
      _
    $region35: #{tpu_custom_call.1} parent=1 // pred_check_branch
      %75 = sbr.rel (0) target = $region37
    $region36: #{tpu_custom_call.1} parent=1 // pred_region
      _
    $region37: #{tpu_custom_call.1} parent=1 // pred_fallthru
      _
    // Predicated region
    $region38: #{tpu_custom_call.1} parent=1 // pred_check
      _
    $region39: #{tpu_custom_call.1} parent=1 // pred_check_branch
      %77 = sbr.rel (0) target = $region41
    $region40: #{tpu_custom_call.1} parent=1 // pred_region
      %78 = dma.done [#allocation3], 128
    $region41: #{tpu_custom_call.1} parent=1 // pred_fallthru
      _
    // Predicated region
    $region42: #{tpu_custom_call.1} parent=1 // pred_check
      _
    $region43: #{tpu_custom_call.1} parent=1 // pred_check_branch
      %80 = sbr.rel (0) target = $region45
    $region44: #{tpu_custom_call.1} parent=1 // pred_region
      %81 = dma.done [#allocation6], 128
    $region45: #{tpu_custom_call.1} parent=1 // pred_fallthru
      _
    // Predicated region
    $region46: #{tpu_custom_call.1} parent=1 // pred_check
      _
    $region47: #{tpu_custom_call.1} parent=1 // pred_check_branch
      %83 = sbr.rel (0) target = $region49
    $region48: #{tpu_custom_call.1} parent=1 // pred_region
      %84 = dma.done [#allocation6], 1024
    $region49: #{tpu_custom_call.1} parent=1 // pred_fallthru
      _
    // Predicated region
    $region50: #{tpu_custom_call.1} parent=1 // pred_check
      _
    $region51: #{tpu_custom_call.1} parent=1 // pred_check_branch
      %86 = sbr.rel (0) target = $region53
    $region52: #{tpu_custom_call.1} parent=1 // pred_region
      %87 = dma.done [#allocation9], 1024
    $region53: #{tpu_custom_call.1} parent=1 // pred_fallthru
      _
    %v89 = vld [vmem:[#allocation2] sm:$0xff]
    %v90 = vpack.c.bf16 %v89, %v89
    %v91 = vld [vmem:[#allocation5] sm:$0xf]
    %v92 = vld [vmem:[#allocation5 + $0x4] sm:$0xf]
    %v93 = vld [vmem:[%s2] sm:$0x1]
    %v95 = vlaneseq
    %v96 = vshrl.u32 %v95, 7
    %v97 = vsub.s32 0, %v96
    %v98 = vrot.slane %v93, %v97
    %v102 = vunpack.c.l.b16 %v91
    %v103 = vunpack.c.l.b16 %v92
    %v104 = vpack.c.b16 %v103, %v102
    %vm106 = vcmask 130048
    %v108 = vsel %vm106, %v90, 0
    %110 = vmatprep.subr.bf16.mxu0 0
    %111 = vmatpush1.bf16.msra.mxu0 0
    %112 = vmatprep.subr.bf16.mxu0 0
    %113 = vmatpush1.bf16.msra.mxu0 0
    %114 = vmatprep.subr.bf16.mxu0 0
    %115 = vmatpush1.bf16.msra.mxu0 0
    %116 = vmatprep.subr.bf16.mxu0 0
    %117 = vmatpush1.bf16.msra.mxu0 0
    %118 = vmatprep.subr.bf16.mxu0 0
    %119 = vmatpush1.bf16.msra.mxu0 0
    %120 = vmatprep.subr.bf16.mxu0 0
    %121 = vmatpush1.bf16.msra.mxu0 0
    %122 = vmatprep.subr.bf16.mxu0 0
    %123 = vmatpush1.bf16.msra.mxu0 0
    %124 = vmatprep.subr.bf16.mxu0 0
    %125 = vmatpush1.bf16.msra.mxu0 %v104
    %126 = vmatprep.subr.bf16.mxu0 0
    %127 = vmatpush2.bf16.msra.mxu0 0
    %128 = vmatprep.subr.bf16.mxu0 0
    %129 = vmatpush2.bf16.msra.mxu0 0
    %130 = vmatprep.subr.bf16.mxu0 0
    %131 = vmatpush2.bf16.msra.mxu0 0
    %132 = vmatprep.subr.bf16.mxu0 0
    %133 = vmatpush2.bf16.msra.mxu0 0
    %134 = vmatprep.subr.bf16.mxu0 0
    %135 = vmatpush2.bf16.msra.mxu0 0
    %136 = vmatprep.subr.bf16.mxu0 0
    %137 = vmatpush2.bf16.msra.mxu0 0
    %138 = vmatprep.subr.bf16.mxu0 0
    %139 = vmatpush2.bf16.msra.mxu0 0
    %140 = vmatprep.subr.bf16.mxu0 0
    %141 = vmatpush2.bf16.msra.mxu0 0
    %142 = vmatprep.mubr.bf16.mxu0 0
    %143 = vmatmul.mubr.bf16.gmra.mxu0 %v108
    %v144 = vpop.f32.mrf.mxu0
    %v145 = vadd.f32 %v98, %v144
    %v146 = vpop.f32.mrf.mxu0
    %v147 = vpop.f32.mrf.mxu0
    %v148 = vpop.f32.mrf.mxu0
    %149 = vdwg.mxu0
    %v150 = vpack.c.bf16 %v145, %v145
    %v151 = vmax.bf16 %v150, 0
    %v152 = vld [vmem:[#allocation7] sm:$0xf]
    %v153 = vld [vmem:[#allocation7 + $0x4] sm:$0xf]
    %v154 = vld [vmem:[#allocation7 + $0x8] sm:$0xf]
    %v155 = vld [vmem:[#allocation7 + $0xc] sm:$0xf]
    %v156 = vld [vmem:[#allocation7 + $0x10] sm:$0xf]
    %v157 = vld [vmem:[#allocation7 + $0x14] sm:$0xf]
    %v158 = vld [vmem:[#allocation7 + $0x18] sm:$0xf]
    %v159 = vld [vmem:[#allocation7 + $0x1c] sm:$0xf]
    %v160 = vld [vmem:[#allocation7 + $0x20] sm:$0xf]
    %v161 = vld [vmem:[#allocation7 + $0x24] sm:$0xf]
    %v162 = vld [vmem:[#allocation7 + $0x28] sm:$0xf]
    %v163 = vld [vmem:[#allocation7 + $0x2c] sm:$0xf]
    %v164 = vld [vmem:[#allocation7 + $0x30] sm:$0xf]
    %v165 = vld [vmem:[#allocation7 + $0x34] sm:$0xf]
    %v166 = vld [vmem:[#allocation7 + $0x38] sm:$0xf]
    %v167 = vld [vmem:[#allocation7 + $0x3c] sm:$0xf]
    %v168 = vld [vmem:[%s4] sm:$0x1]
    %v170 = vlaneseq
    %v171 = vshrl.u32 %v170, 7
    %v172 = vsub.s32 0, %v171
    %v173 = vrot.slane %v168, %v172
    %v191 = vunpack.c.l.b16 %v152
    %v192 = vunpack.c.l.b16 %v153
    %v193 = vunpack.c.l.b16 %v154
    %v194 = vunpack.c.l.b16 %v155
    %v195 = vunpack.c.l.b16 %v156
    %v196 = vunpack.c.l.b16 %v157
    %v197 = vunpack.c.l.b16 %v158
    %v198 = vunpack.c.l.b16 %v159
    %v199 = vunpack.c.l.b16 %v160
    %v200 = vunpack.c.l.b16 %v161
    %v201 = vunpack.c.l.b16 %v162
    %v202 = vunpack.c.l.b16 %v163
    %v203 = vunpack.c.l.b16 %v164
    %v204 = vunpack.c.l.b16 %v165
    %v205 = vunpack.c.l.b16 %v166
    %v206 = vunpack.c.l.b16 %v167
    %v207 = vpack.c.b16 %v192, %v191
    %v208 = vpack.c.b16 %v194, %v193
    %v209 = vpack.c.b16 %v196, %v195
    %v210 = vpack.c.b16 %v198, %v197
    %v211 = vpack.c.b16 %v200, %v199
    %v212 = vpack.c.b16 %v202, %v201
    %v213 = vpack.c.b16 %v204, %v203
    %v214 = vpack.c.b16 %v206, %v205
    %223 = vmatprep.subr.bf16.mxu0 0
    %224 = vmatpush1.bf16.msra.mxu0 %v214
    %225 = vmatprep.subr.bf16.mxu0 0
    %226 = vmatpush1.bf16.msra.mxu0 %v213
    %227 = vmatprep.subr.bf16.mxu0 0
    %228 = vmatpush1.bf16.msra.mxu0 %v212
    %229 = vmatprep.subr.bf16.mxu0 0
    %230 = vmatpush1.bf16.msra.mxu0 %v211
    %231 = vmatprep.subr.bf16.mxu0 0
    %232 = vmatpush1.bf16.msra.mxu0 %v210
    %233 = vmatprep.subr.bf16.mxu0 0
    %234 = vmatpush1.bf16.msra.mxu0 %v209
    %235 = vmatprep.subr.bf16.mxu0 0
    %236 = vmatpush1.bf16.msra.mxu0 %v208
    %237 = vmatprep.subr.bf16.mxu0 0
    %238 = vmatpush1.bf16.msra.mxu0 %v207
    %239 = vmatprep.subr.bf16.mxu0 0
    %240 = vmatpush2.bf16.msra.mxu0 0
    %241 = vmatprep.subr.bf16.mxu0 0
    %242 = vmatpush2.bf16.msra.mxu0 0
    %243 = vmatprep.subr.bf16.mxu0 0
    %244 = vmatpush2.bf16.msra.mxu0 0
    %245 = vmatprep.subr.bf16.mxu0 0
    %246 = vmatpush2.bf16.msra.mxu0 0
    %247 = vmatprep.subr.bf16.mxu0 0
    %248 = vmatpush2.bf16.msra.mxu0 0
    %249 = vmatprep.subr.bf16.mxu0 0
    %250 = vmatpush2.bf16.msra.mxu0 0
    %251 = vmatprep.subr.bf16.mxu0 0
    %252 = vmatpush2.bf16.msra.mxu0 0
    %253 = vmatprep.subr.bf16.mxu0 0
    %254 = vmatpush2.bf16.msra.mxu0 0
    %255 = vmatprep.mubr.bf16.mxu0 0
    %256 = vmatmul.mubr.bf16.gmra.mxu0 %v151
    %v257 = vpop.f32.mrf.mxu0
    %v258 = vadd.f32 %v173, %v257
    %v259 = vpop.f32.mrf.mxu0
    %v260 = vpop.f32.mrf.mxu0
    %v261 = vpop.f32.mrf.mxu0
    %262 = vdwg.mxu0
    %v263 = vpack.c.bf16 %v258, %v258
    %v264 = vmax.bf16 %v263, 0
    %v265 = vld [vmem:[#allocation8] sm:$0xf]
    %v266 = vld [vmem:[#allocation8 + $0x4] sm:$0xf]
    %v267 = vld [vmem:[#allocation8 + $0x8] sm:$0xf]
    %v268 = vld [vmem:[#allocation8 + $0xc] sm:$0xf]
    %v269 = vld [vmem:[#allocation8 + $0x10] sm:$0xf]
    %v270 = vld [vmem:[#allocation8 + $0x14] sm:$0xf]
    %v271 = vld [vmem:[#allocation8 + $0x18] sm:$0xf]
    %v272 = vld [vmem:[#allocation8 + $0x1c] sm:$0xf]
    %v273 = vld [vmem:[#allocation8 + $0x20] sm:$0xf]
    %v274 = vld [vmem:[#allocation8 + $0x24] sm:$0xf]
    %v275 = vld [vmem:[#allocation8 + $0x28] sm:$0xf]
    %v276 = vld [vmem:[#allocation8 + $0x2c] sm:$0xf]
    %v277 = vld [vmem:[#allocation8 + $0x30] sm:$0xf]
    %v278 = vld [vmem:[#allocation8 + $0x34] sm:$0xf]
    %v279 = vld [vmem:[#allocation8 + $0x38] sm:$0xf]
    %v280 = vld [vmem:[#allocation8 + $0x3c] sm:$0xf]
    %v281 = vld [vmem:[%s6] sm:$0x1]
    %v283 = vlaneseq
    %v284 = vshrl.u32 %v283, 7
    %v285 = vsub.s32 0, %v284
    %v286 = vrot.slane %v281, %v285
    %v304 = vunpack.c.l.b16 %v265
    %v305 = vunpack.c.l.b16 %v266
    %v306 = vunpack.c.l.b16 %v267
    %v307 = vunpack.c.l.b16 %v268
    %v308 = vunpack.c.l.b16 %v269
    %v309 = vunpack.c.l.b16 %v270
    %v310 = vunpack.c.l.b16 %v271
    %v311 = vunpack.c.l.b16 %v272
    %v312 = vunpack.c.l.b16 %v273
    %v313 = vunpack.c.l.b16 %v274
    %v314 = vunpack.c.l.b16 %v275
    %v315 = vunpack.c.l.b16 %v276
    %v316 = vunpack.c.l.b16 %v277
    %v317 = vunpack.c.l.b16 %v278
    %v318 = vunpack.c.l.b16 %v279
    %v319 = vunpack.c.l.b16 %v280
    %v320 = vpack.c.b16 %v305, %v304
    %v321 = vpack.c.b16 %v307, %v306
    %v322 = vpack.c.b16 %v309, %v308
    %v323 = vpack.c.b16 %v311, %v310
    %v324 = vpack.c.b16 %v313, %v312
    %v325 = vpack.c.b16 %v315, %v314
    %v326 = vpack.c.b16 %v317, %v316
    %v327 = vpack.c.b16 %v319, %v318
    %336 = vmatprep.subr.bf16.mxu0 0
    %337 = vmatpush1.bf16.msra.mxu0 %v327
    %338 = vmatprep.subr.bf16.mxu0 0
    %339 = vmatpush1.bf16.msra.mxu0 %v326
    %340 = vmatprep.subr.bf16.mxu0 0
    %341 = vmatpush1.bf16.msra.mxu0 %v325
    %342 = vmatprep.subr.bf16.mxu0 0
    %343 = vmatpush1.bf16.msra.mxu0 %v324
    %344 = vmatprep.subr.bf16.mxu0 0
    %345 = vmatpush1.bf16.msra.mxu0 %v323
    %346 = vmatprep.subr.bf16.mxu0 0
    %347 = vmatpush1.bf16.msra.mxu0 %v322
    %348 = vmatprep.subr.bf16.mxu0 0
    %349 = vmatpush1.bf16.msra.mxu0 %v321
    %350 = vmatprep.subr.bf16.mxu0 0
    %351 = vmatpush1.bf16.msra.mxu0 %v320
    %352 = vmatprep.subr.bf16.mxu0 0
    %353 = vmatpush2.bf16.msra.mxu0 0
    %354 = vmatprep.subr.bf16.mxu0 0
    %355 = vmatpush2.bf16.msra.mxu0 0
    %356 = vmatprep.subr.bf16.mxu0 0
    %357 = vmatpush2.bf16.msra.mxu0 0
    %358 = vmatprep.subr.bf16.mxu0 0
    %359 = vmatpush2.bf16.msra.mxu0 0
    %360 = vmatprep.subr.bf16.mxu0 0
    %361 = vmatpush2.bf16.msra.mxu0 0
    %362 = vmatprep.subr.bf16.mxu0 0
    %363 = vmatpush2.bf16.msra.mxu0 0
    %364 = vmatprep.subr.bf16.mxu0 0
    %365 = vmatpush2.bf16.msra.mxu0 0
    %366 = vmatprep.subr.bf16.mxu0 0
    %367 = vmatpush2.bf16.msra.mxu0 0
    %368 = vmatprep.mubr.bf16.mxu0 0
    %369 = vmatmul.mubr.bf16.gmra.mxu0 %v264
    %v370 = vpop.f32.mrf.mxu0
    %v371 = vadd.f32 %v286, %v370
    %v372 = vpop.f32.mrf.mxu0
    %v373 = vpop.f32.mrf.mxu0
    %v374 = vpop.f32.mrf.mxu0
    %375 = vdwg.mxu0
    %v376 = vld [vmem:[%s7] sm:$0x1]
    %v378 = vlaneseq
    %v379 = vshrl.u32 %v378, 7
    %v380 = vsub.s32 0, %v379
    %v381 = vrot.slane %v376, %v380
    %v383 = vmax.f32 %v371, %v381
    %v384 = vld [vmem:[%s8] sm:$0x1]
    %v386 = vlaneseq
    %v387 = vshrl.u32 %v386, 7
    %v388 = vsub.s32 0, %v387
    %v389 = vrot.slane %v384, %v388
    %v391 = vmin.f32 %v383, %v389
    %392 = vst [vmem:[#allocation10] sm:$0xff] %v391
    // Predicated region
    $region54: #{tpu_custom_call.1} parent=1 // pred_check
      _
    $region55: #{tpu_custom_call.1} parent=1 // pred_check_branch
      %394 = sbr.rel (0) target = $region57
    $region56: #{tpu_custom_call.1} parent=1 // pred_region
      %s396 = ssub.s32 128, 32
      %397 = vsyncadd [#allocation4], %s396
      %s398 = sshll.u32 [#allocation10], 4
      %s399 = int_to_ptr.vmem [resolvable:$true] %s398
      %404 = dma.vmem_to_hbm [thread:$0]  %s399, 32, %s9, [#allocation4], 32, 32, 2
    $region57: #{tpu_custom_call.1} parent=1 // pred_fallthru
      _
    // Predicated region
    $region58: #{tpu_custom_call.1} parent=1 // pred_check
      _
    $region59: #{tpu_custom_call.1} parent=1 // pred_check_branch
      %406 = sbr.rel (0) target = $region61
    $region60: #{tpu_custom_call.1} parent=1 // pred_region
      %407 = dma.done [#allocation4], 128
    $region61: #{tpu_custom_call.1} parent=1 // pred_fallthru
      _
    %408 = vsyncpa [#allocation3], 1
    %409 = vsyncpa [#allocation6], 1
    %410 = vsyncpa [#allocation9], 1
    %411 = vsyncpa [#allocation4], 1

</llo_original>
